<compile_context>
chip_gen: v6e
topology: v6e:2x2x1
jax: 0.10.0
libtpu: 0.0.40
codegen_flags: <defaults>
</compile_context>

<pallas_src>
import functools

import jax
import jax.numpy as jnp
from jax.experimental import pallas as pl
from jax.experimental.pallas import tpu as pltpu


def _round_up(n, m):
    return ((n + m - 1) // m) * m


def _dropout_keep_mask(shape, seed):
    """Deterministic per-element keep mask, P(keep)=0.5, from an int32 hash.

    Pure jnp integer ops (iota / mul / xor / shift) so it works on the TPU VPU
    and in interpret mode.  Bit-stream intentionally does not match torch RNG.
    """
    r = jax.lax.broadcasted_iota(jnp.int32, shape, 0)
    c = jax.lax.broadcasted_iota(jnp.int32, shape, 1)
    z = seed + r * jnp.int32(12582917) + c * jnp.int32(28629151)
    z = (z ^ (z >> 16)) * jnp.int32(73244475)
    z = (z ^ (z >> 16)) * jnp.int32(73244475)
    z = z ^ (z >> 16)
    return (z & jnp.int32(1)) == jnp.int32(0)


def _sage_layer(a, h_src, w_stacked, b, *, n_dst, act_dropout, training, seed):
    """One SAGEConv('mean') layer on in-kernel values (everything stays in VMEM)."""
    h_src_bf = h_src.astype(jnp.bfloat16)
    # mean neighbor aggregation on the MXU (bf16 in, f32 accumulate)
    h_neigh = jnp.dot(a, h_src_bf, preferred_element_type=jnp.float32)
    # dst nodes are the leading n_dst source nodes (DGL block convention)
    h_dst = h_src_bf[:n_dst, :]
    # single stacked projection: [h_dst | h_neigh] @ [[W_self]; [W_neigh]]
    h_cat = jnp.concatenate([h_dst, h_neigh.astype(jnp.bfloat16)], axis=-1)
    out = jnp.dot(h_cat, w_stacked, preferred_element_type=jnp.float32) + b
    if act_dropout:
        out = jnp.maximum(out, 0.0)
        if training:
            keep = _dropout_keep_mask(out.shape, seed)
            out = jnp.where(keep, out * 2.0, 0.0)  # p=0.5, scale by 1/(1-p)
    return out


def _sage_fused_kernel(seed_ref,
                       a1_ref, a2_ref, a3_ref, x_ref,
                       w1_ref, w2_ref, w3_ref,
                       b1_ref, b2_ref, b3_ref,
                       o_ref, *, n_dsts, training):
    """Fused 3-layer GraphSAGE forward.

    seed_ref : SMEM (1,) int32 — base dropout seed
    a*_ref   : VMEM [n_dst_l, n_src_l] bf16 — row-normalized mean aggregation
    x_ref    : VMEM [n_src_0, f_pad]   bf16 — padded input node features
    w*_ref   : VMEM [2*f_pad, f_pad]   bf16 — stacked [W_self; W_neigh] (padded)
    b*_ref   : VMEM [1, f_pad]         f32  — padded bias
    o_ref    : VMEM [n_dst_2, f_pad]   f32  — padded output features
    """
    seed0 = seed_ref[0]
    a_refs = (a1_ref, a2_ref, a3_ref)
    w_refs = (w1_ref, w2_ref, w3_ref)
    b_refs = (b1_ref, b2_ref, b3_ref)
    n_layers = len(a_refs)

    h = x_ref[...]
    for l in range(n_layers):
        h = _sage_layer(
            a_refs[l][...], h, w_refs[l][...], b_refs[l][...],
            n_dst=n_dsts[l],
            act_dropout=(l != n_layers - 1),
            training=training,
            # fold the (static) layer index into the seed so layers get
            # independent dropout masks
            seed=seed0 + jnp.int32(l * 1000003),
        )
    o_ref[...] = h.astype(o_ref.dtype)


def _pad2(x, rows, cols):
    r, c = x.shape
    return jnp.pad(x, ((0, rows - r), (0, cols - c)))


def sage_forward(blocks, x, params, seed, *, training=True):
    """Fused forward pass.

    blocks : list of dense [n_dst, n_src] mean-aggregation matrices (f32)
    x      : [n_src_0, in_size] f32 input features of the outermost block
    params : list of (W_self [f_in,f_out], W_neigh [f_in,f_out], bias [f_out])
    seed   : (1,) int32 dropout seed
    """
    assert len(blocks) == len(params) == 3
    n_dsts = tuple(int(a.shape[0]) for a in blocks)
    out_size = int(params[-1][0].shape[1])

    # lane-dense feature padding (all feature dims padded with zeros -> exact)
    feat_dims = [int(x.shape[1])] + [int(p[0].shape[1]) for p in params]
    f_pad = _round_up(max(feat_dims), 128)

    # host-side packing: bf16 matmul operands, stacked + padded weights
    x_p = _pad2(x, x.shape[0], f_pad).astype(jnp.bfloat16)
    a_p, w_p, b_p = [], [], []
    for a, (w_s, w_n, b) in zip(blocks, params):
        a_p.append(a.astype(jnp.bfloat16))
        w_stacked = jnp.concatenate(
            [_pad2(w_s, f_pad, f_pad), _pad2(w_n, f_pad, f_pad)], axis=0
        ).astype(jnp.bfloat16)
        w_p.append(w_stacked)
        b_p.append(jnp.pad(b, (0, f_pad - b.shape[0]))
                   .reshape(1, f_pad).astype(jnp.float32))

    kernel = functools.partial(_sage_fused_kernel,
                               n_dsts=n_dsts, training=training)
    vmem = pl.BlockSpec(memory_space=pltpu.MemorySpace.VMEM)
    smem = pl.BlockSpec(memory_space=pltpu.MemorySpace.SMEM)

    # TODO(synk): for production-scale sampled blocks (n_src in the tens of
    # thousands) the dense A must be tiled with a grid (parallel n_dst axis,
    # arbitrary n_src contraction + f32 accumulator) or replaced by a CSR
    # gather aggregation; at these toy shapes everything fits VMEM untiled.
    out_p = pl.pallas_call(
        kernel,
        out_shape=jax.ShapeDtypeStruct((n_dsts[-1], f_pad), jnp.float32),
        in_specs=[smem] + [vmem] * 10,
        out_specs=vmem,
    )(seed, a_p[0], a_p[1], a_p[2], x_p,
      w_p[0], w_p[1], w_p[2], b_p[0], b_p[1], b_p[2])

    return out_p[:, :out_size]


def _make_mean_block(key, n_dst, n_src, p=0.3):
    """Dense row-normalized adjacency of a DGL-style block (with self loops)."""
    adj = jax.random.bernoulli(key, p, (n_dst, n_src)).astype(jnp.float32)
    adj = adj.at[jnp.arange(n_dst), jnp.arange(n_dst)].set(1.0)
    deg = jnp.sum(adj, axis=-1, keepdims=True)
    return adj / deg


if __name__ == "__main__":
    # small synthetic problem:  in_size=32, hid_size=64, out_size=16
    in_size, hid_size, out_size = 32, 64, 16
    # node counts per sampled block (src -> dst): 64 -> 48 -> 32 -> 16
    node_counts = [64, 48, 32, 16]

    key = jax.random.PRNGKey(0)
    keys = jax.random.split(key, 16)

    # deterministic parameters: 3 x (W_self, W_neigh, bias)
    dims = [(in_size, hid_size), (hid_size, hid_size), (hid_size, out_size)]
    params = []
    for l, (fi, fo) in enumerate(dims):
        scale = 1.0 / float(fi) ** 0.5
        w_self = jax.random.uniform(keys[3 * l + 0], (fi, fo),
                                    jnp.float32, -scale, scale)
        w_neigh = jax.random.uniform(keys[3 * l + 1], (fi, fo),
                                     jnp.float32, -scale, scale)
        bias = jnp.zeros((fo,), jnp.float32)
        params.append((w_self, w_neigh, bias))

    # blocks (dense mean-aggregation matrices)
    blocks = [
        _make_mean_block(keys[9 + l], node_counts[l + 1], node_counts[l])
        for l in range(3)
    ]

    # input node features for the outermost block's source nodes
    x = jax.random.normal(keys[12], (node_counts[0], in_size), jnp.float32)

    # dropout seed (int32 scalar in SMEM; layer index folded in-kernel)
    seed = jnp.array([17], dtype=jnp.int32)

    out = sage_forward(blocks, x, params, seed, training=True)
    out = jax.block_until_ready(out)
    assert out.shape == (node_counts[-1], out_size), out.shape
    assert bool(jnp.all(jnp.isfinite(out)))

    # TODO(synk): DGL graph sampling / DataLoader-driven `inference()` is
    # host-side orchestration with no Pallas equivalent; only the fused
    # 3-layer SAGEConv forward compute is implemented as a kernel.
    print("KERNEL_OK")
</pallas_src>

<mosaic_0001>
module attributes {stable_mosaic.version = 11 : i64} {
  func.func @_sage_fused_kernel(%arg0: memref<1xi32, #tpu.memory_space<smem>>, %arg1: memref<48x64xbf16, #tpu.memory_space<vmem>>, %arg2: memref<32x48xbf16, #tpu.memory_space<vmem>>, %arg3: memref<16x32xbf16, #tpu.memory_space<vmem>>, %arg4: memref<64x128xbf16, #tpu.memory_space<vmem>>, %arg5: memref<256x128xbf16, #tpu.memory_space<vmem>>, %arg6: memref<256x128xbf16, #tpu.memory_space<vmem>>, %arg7: memref<256x128xbf16, #tpu.memory_space<vmem>>, %arg8: memref<1x128xf32, #tpu.memory_space<vmem>>, %arg9: memref<1x128xf32, #tpu.memory_space<vmem>>, %arg10: memref<1x128xf32, #tpu.memory_space<vmem>>, %arg11: memref<16x128xf32, #tpu.memory_space<vmem>>) attributes {dimension_semantics = [], scalar_prefetch = 0 : i64, scratch_operands = 0 : i64, tpu.core_type = #tpu.core_type<tc>} {
    %c0 = arith.constant 0 : index
    %0 = memref.load %arg0[%c0] : memref<1xi32, #tpu.memory_space<smem>>
    %c0_0 = arith.constant 0 : index
    %c0_1 = arith.constant 0 : index
    %1 = vector.load %arg4[%c0_0, %c0_1] : memref<64x128xbf16, #tpu.memory_space<vmem>>, vector<64x128xbf16>
    %c0_2 = arith.constant 0 : index
    %c0_3 = arith.constant 0 : index
    %2 = vector.load %arg1[%c0_2, %c0_3] : memref<48x64xbf16, #tpu.memory_space<vmem>>, vector<48x64xbf16>
    %c0_4 = arith.constant 0 : index
    %c0_5 = arith.constant 0 : index
    %3 = vector.load %arg5[%c0_4, %c0_5] : memref<256x128xbf16, #tpu.memory_space<vmem>>, vector<256x128xbf16>
    %c0_6 = arith.constant 0 : index
    %c0_7 = arith.constant 0 : index
    %4 = vector.load %arg8[%c0_6, %c0_7] : memref<1x128xf32, #tpu.memory_space<vmem>>, vector<1x128xf32>
    %c0_i32 = arith.constant 0 : i32
    %5 = arith.addi %0, %c0_i32 : i32
    %cst = arith.constant dense<0.000000e+00> : vector<48x128xf32>
    %6 = tpu.matmul %2, %1, %cst {dimension_numbers = #tpu.dot_dimension_numbers<[1], [0], [0], [1], [0, 0, 1, 1], [], []>} : vector<48x64xbf16>, vector<64x128xbf16>, vector<48x128xf32> -> vector<48x128xf32>
    %7 = vector.extract_strided_slice %1 {offsets = [0, 0], sizes = [48, 128], strides = [1, 1]} : vector<64x128xbf16> to vector<48x128xbf16>
    %8 = arith.truncf %6 : vector<48x128xf32> to vector<48x128xbf16>
    %9 = tpu.concatenate %7, %8 in 1 : vector<48x128xbf16>, vector<48x128xbf16> -> vector<48x256xbf16>
    %cst_8 = arith.constant dense<0.000000e+00> : vector<48x128xf32>
    %10 = tpu.matmul %9, %3, %cst_8 {dimension_numbers = #tpu.dot_dimension_numbers<[1], [0], [0], [1], [0, 0, 1, 1], [], []>} : vector<48x256xbf16>, vector<256x128xbf16>, vector<48x128xf32> -> vector<48x128xf32>
    %11 = vector.broadcast %4 : vector<1x128xf32> to vector<48x128xf32>
    %12 = arith.addf %10, %11 : vector<48x128xf32>
    %cst_9 = arith.constant 0.000000e+00 : f32
    %13 = vector.broadcast %cst_9 : f32 to vector<48x128xf32>
    %14 = arith.maximumf %12, %13 : vector<48x128xf32>
    %15 = tpu.iota {dimensions = array<i32: 0>} : vector<48x128xi32>
    %16 = tpu.iota {dimensions = array<i32: 1>} : vector<48x128xi32>
    %c12582917_i32 = arith.constant 12582917 : i32
    %17 = vector.broadcast %c12582917_i32 : i32 to vector<48x128xi32>
    %18 = arith.muli %15, %17 : vector<48x128xi32>
    %19 = vector.broadcast %5 : i32 to vector<48x128xi32>
    %20 = arith.addi %19, %18 : vector<48x128xi32>
    %c28629151_i32 = arith.constant 28629151 : i32
    %21 = vector.broadcast %c28629151_i32 : i32 to vector<48x128xi32>
    %22 = arith.muli %16, %21 : vector<48x128xi32>
    %23 = arith.addi %20, %22 : vector<48x128xi32>
    %c16_i32 = arith.constant 16 : i32
    %24 = vector.broadcast %c16_i32 : i32 to vector<48x128xi32>
    %25 = arith.shrsi %23, %24 : vector<48x128xi32>
    %26 = arith.xori %23, %25 : vector<48x128xi32>
    %c73244475_i32 = arith.constant 73244475 : i32
    %27 = vector.broadcast %c73244475_i32 : i32 to vector<48x128xi32>
    %28 = arith.muli %26, %27 : vector<48x128xi32>
    %c16_i32_10 = arith.constant 16 : i32
    %29 = vector.broadcast %c16_i32_10 : i32 to vector<48x128xi32>
    %30 = arith.shrsi %28, %29 : vector<48x128xi32>
    %31 = arith.xori %28, %30 : vector<48x128xi32>
    %c73244475_i32_11 = arith.constant 73244475 : i32
    %32 = vector.broadcast %c73244475_i32_11 : i32 to vector<48x128xi32>
    %33 = arith.muli %31, %32 : vector<48x128xi32>
    %c16_i32_12 = arith.constant 16 : i32
    %34 = vector.broadcast %c16_i32_12 : i32 to vector<48x128xi32>
    %35 = arith.shrsi %33, %34 : vector<48x128xi32>
    %36 = arith.xori %33, %35 : vector<48x128xi32>
    %c1_i32 = arith.constant 1 : i32
    %37 = vector.broadcast %c1_i32 : i32 to vector<48x128xi32>
    %38 = arith.andi %36, %37 : vector<48x128xi32>
    %c0_i32_13 = arith.constant 0 : i32
    %39 = vector.broadcast %c0_i32_13 : i32 to vector<48x128xi32>
    %40 = arith.cmpi eq, %38, %39 : vector<48x128xi32>
    %cst_14 = arith.constant 2.000000e+00 : f32
    %41 = vector.broadcast %cst_14 : f32 to vector<48x128xf32>
    %42 = arith.mulf %14, %41 : vector<48x128xf32>
    %cst_15 = arith.constant 0.000000e+00 : f32
    %43 = vector.broadcast %cst_15 : f32 to vector<48x128xf32>
    %44 = arith.select %40, %42, %43 : vector<48x128xi1>, vector<48x128xf32>
    %c0_16 = arith.constant 0 : index
    %c0_17 = arith.constant 0 : index
    %45 = vector.load %arg2[%c0_16, %c0_17] : memref<32x48xbf16, #tpu.memory_space<vmem>>, vector<32x48xbf16>
    %c0_18 = arith.constant 0 : index
    %c0_19 = arith.constant 0 : index
    %46 = vector.load %arg6[%c0_18, %c0_19] : memref<256x128xbf16, #tpu.memory_space<vmem>>, vector<256x128xbf16>
    %c0_20 = arith.constant 0 : index
    %c0_21 = arith.constant 0 : index
    %47 = vector.load %arg9[%c0_20, %c0_21] : memref<1x128xf32, #tpu.memory_space<vmem>>, vector<1x128xf32>
    %c1000003_i32 = arith.constant 1000003 : i32
    %48 = arith.addi %0, %c1000003_i32 : i32
    %49 = arith.truncf %44 : vector<48x128xf32> to vector<48x128xbf16>
    %cst_22 = arith.constant dense<0.000000e+00> : vector<32x128xf32>
    %50 = tpu.matmul %45, %49, %cst_22 {dimension_numbers = #tpu.dot_dimension_numbers<[1], [0], [0], [1], [0, 0, 1, 1], [], []>} : vector<32x48xbf16>, vector<48x128xbf16>, vector<32x128xf32> -> vector<32x128xf32>
    %51 = vector.extract_strided_slice %49 {offsets = [0, 0], sizes = [32, 128], strides = [1, 1]} : vector<48x128xbf16> to vector<32x128xbf16>
    %52 = arith.truncf %50 : vector<32x128xf32> to vector<32x128xbf16>
    %53 = tpu.concatenate %51, %52 in 1 : vector<32x128xbf16>, vector<32x128xbf16> -> vector<32x256xbf16>
    %cst_23 = arith.constant dense<0.000000e+00> : vector<32x128xf32>
    %54 = tpu.matmul %53, %46, %cst_23 {dimension_numbers = #tpu.dot_dimension_numbers<[1], [0], [0], [1], [0, 0, 1, 1], [], []>} : vector<32x256xbf16>, vector<256x128xbf16>, vector<32x128xf32> -> vector<32x128xf32>
    %55 = vector.broadcast %47 : vector<1x128xf32> to vector<32x128xf32>
    %56 = arith.addf %54, %55 : vector<32x128xf32>
    %cst_24 = arith.constant 0.000000e+00 : f32
    %57 = vector.broadcast %cst_24 : f32 to vector<32x128xf32>
    %58 = arith.maximumf %56, %57 : vector<32x128xf32>
    %59 = tpu.iota {dimensions = array<i32: 0>} : vector<32x128xi32>
    %60 = tpu.iota {dimensions = array<i32: 1>} : vector<32x128xi32>
    %c12582917_i32_25 = arith.constant 12582917 : i32
    %61 = vector.broadcast %c12582917_i32_25 : i32 to vector<32x128xi32>
    %62 = arith.muli %59, %61 : vector<32x128xi32>
    %63 = vector.broadcast %48 : i32 to vector<32x128xi32>
    %64 = arith.addi %63, %62 : vector<32x128xi32>
    %c28629151_i32_26 = arith.constant 28629151 : i32
    %65 = vector.broadcast %c28629151_i32_26 : i32 to vector<32x128xi32>
    %66 = arith.muli %60, %65 : vector<32x128xi32>
    %67 = arith.addi %64, %66 : vector<32x128xi32>
    %c16_i32_27 = arith.constant 16 : i32
    %68 = vector.broadcast %c16_i32_27 : i32 to vector<32x128xi32>
    %69 = arith.shrsi %67, %68 : vector<32x128xi32>
    %70 = arith.xori %67, %69 : vector<32x128xi32>
    %c73244475_i32_28 = arith.constant 73244475 : i32
    %71 = vector.broadcast %c73244475_i32_28 : i32 to vector<32x128xi32>
    %72 = arith.muli %70, %71 : vector<32x128xi32>
    %c16_i32_29 = arith.constant 16 : i32
    %73 = vector.broadcast %c16_i32_29 : i32 to vector<32x128xi32>
    %74 = arith.shrsi %72, %73 : vector<32x128xi32>
    %75 = arith.xori %72, %74 : vector<32x128xi32>
    %c73244475_i32_30 = arith.constant 73244475 : i32
    %76 = vector.broadcast %c73244475_i32_30 : i32 to vector<32x128xi32>
    %77 = arith.muli %75, %76 : vector<32x128xi32>
    %c16_i32_31 = arith.constant 16 : i32
    %78 = vector.broadcast %c16_i32_31 : i32 to vector<32x128xi32>
    %79 = arith.shrsi %77, %78 : vector<32x128xi32>
    %80 = arith.xori %77, %79 : vector<32x128xi32>
    %c1_i32_32 = arith.constant 1 : i32
    %81 = vector.broadcast %c1_i32_32 : i32 to vector<32x128xi32>
    %82 = arith.andi %80, %81 : vector<32x128xi32>
    %c0_i32_33 = arith.constant 0 : i32
    %83 = vector.broadcast %c0_i32_33 : i32 to vector<32x128xi32>
    %84 = arith.cmpi eq, %82, %83 : vector<32x128xi32>
    %cst_34 = arith.constant 2.000000e+00 : f32
    %85 = vector.broadcast %cst_34 : f32 to vector<32x128xf32>
    %86 = arith.mulf %58, %85 : vector<32x128xf32>
    %cst_35 = arith.constant 0.000000e+00 : f32
    %87 = vector.broadcast %cst_35 : f32 to vector<32x128xf32>
    %88 = arith.select %84, %86, %87 : vector<32x128xi1>, vector<32x128xf32>
    %c0_36 = arith.constant 0 : index
    %c0_37 = arith.constant 0 : index
    %89 = vector.load %arg3[%c0_36, %c0_37] : memref<16x32xbf16, #tpu.memory_space<vmem>>, vector<16x32xbf16>
    %c0_38 = arith.constant 0 : index
    %c0_39 = arith.constant 0 : index
    %90 = vector.load %arg7[%c0_38, %c0_39] : memref<256x128xbf16, #tpu.memory_space<vmem>>, vector<256x128xbf16>
    %c0_40 = arith.constant 0 : index
    %c0_41 = arith.constant 0 : index
    %91 = vector.load %arg10[%c0_40, %c0_41] : memref<1x128xf32, #tpu.memory_space<vmem>>, vector<1x128xf32>
    %92 = arith.truncf %88 : vector<32x128xf32> to vector<32x128xbf16>
    %cst_42 = arith.constant dense<0.000000e+00> : vector<16x128xf32>
    %93 = tpu.matmul %89, %92, %cst_42 {dimension_numbers = #tpu.dot_dimension_numbers<[1], [0], [0], [1], [0, 0, 1, 1], [], []>} : vector<16x32xbf16>, vector<32x128xbf16>, vector<16x128xf32> -> vector<16x128xf32>
    %94 = vector.extract_strided_slice %92 {offsets = [0, 0], sizes = [16, 128], strides = [1, 1]} : vector<32x128xbf16> to vector<16x128xbf16>
    %95 = arith.truncf %93 : vector<16x128xf32> to vector<16x128xbf16>
    %96 = tpu.concatenate %94, %95 in 1 : vector<16x128xbf16>, vector<16x128xbf16> -> vector<16x256xbf16>
    %cst_43 = arith.constant dense<0.000000e+00> : vector<16x128xf32>
    %97 = tpu.matmul %96, %90, %cst_43 {dimension_numbers = #tpu.dot_dimension_numbers<[1], [0], [0], [1], [0, 0, 1, 1], [], []>} : vector<16x256xbf16>, vector<256x128xbf16>, vector<16x128xf32> -> vector<16x128xf32>
    %98 = vector.broadcast %91 : vector<1x128xf32> to vector<16x128xf32>
    %99 = arith.addf %97, %98 : vector<16x128xf32>
    %c0_44 = arith.constant 0 : index
    %c0_45 = arith.constant 0 : index
    %100 = vector.load %arg11[%c0_44, %c0_45] : memref<16x128xf32, #tpu.memory_space<vmem>>, vector<16x128xf32>
    tpu.vector_store %arg11[%c0_44, %c0_45], %99 {strides = array<i32>} : memref<16x128xf32, #tpu.memory_space<vmem>>, vector<16x128xf32>,
    return
  }
}

</mosaic_0001>

<llo_original>
// kernel: tpu_custom_call.1
$region0: #{tpu_custom_call.1}
  #allocation0 [shape = 'u32[]', space=smem, size = 0x4, offset = 0x4, fixed_abs, tag = 'smem constant byte address 0x4 - core index']
  #allocation1 [shape = 'u32[144,128]{1,0:T(1,128)}', space=vmem, size = 0x12000, scoped, tag = 'internal scratch']
  #allocation2 [shape = 's32[1]{0:T(128)S(6)}', space=smem, size = 0x200, scoped, tag = 'scoped memory for tpu_custom_call.1']
  %s0 = inlined_call_operand.<no memory space> [shape: s32[1], index: 0, kind: input, shape index: {}]
  %s1 = inlined_call_operand.hbm [shape: bf16[48,64], index: 1, kind: input, shape index: {}]
  %s2 = inlined_call_operand.hbm [shape: bf16[32,48], index: 2, kind: input, shape index: {}]
  %s3 = inlined_call_operand.hbm [shape: bf16[16,32], index: 3, kind: input, shape index: {}]
  %s4 = inlined_call_operand.hbm [shape: bf16[64,128], index: 4, kind: input, shape index: {}]
  %s5 = inlined_call_operand.hbm [shape: bf16[256,128], index: 5, kind: input, shape index: {}]
  %s6 = inlined_call_operand.hbm [shape: bf16[256,128], index: 6, kind: input, shape index: {}]
  %s7 = inlined_call_operand.hbm [shape: bf16[256,128], index: 7, kind: input, shape index: {}]
  %s8 = inlined_call_operand.vmem [shape: f32[1,128], index: 8, kind: input, shape index: {}]
  %s9 = inlined_call_operand.vmem [shape: f32[1,128], index: 9, kind: input, shape index: {}]
  %s10 = inlined_call_operand.vmem [shape: f32[1,128], index: 10, kind: input, shape index: {}]
  %s11 = inlined_call_operand.hbm [shape: f32[16,128], index: 11, kind: output, shape index: {}]
  %s12 = sld [smem:[#allocation0]]
  $region82: #{tpu_custom_call.1} parent=0
    _
  %s14 = ssub.s32 1, %s12
  %s15 = scalar_select 0, %s14, %s12
  %16 = sst [smem:[#allocation2]] %s0
  $region1: #{tpu_custom_call.1} parent=0
    #allocation3 [shape = 'u8[12288]{0}', space=vmem, size = 0x3000, scoped, tag = 'input window, operand 1, single buffered']
    #allocation4 [shape = 's32[1]{0}', space=sflag, size = 0x4, scoped, tag = 'scoped memory for tpu_custom_call.1']
    #allocation5 [shape = 's32[1]{0}', space=sflag, size = 0x4, scoped, tag = 'scoped memory for tpu_custom_call.1']
    #allocation6 [shape = 'u8[8192]{0}', space=vmem, size = 0x2000, scoped, tag = 'input window, operand 2, single buffered']
    #allocation7 [shape = 's32[1]{0}', space=sflag, size = 0x4, scoped, tag = 'scoped memory for tpu_custom_call.1']
    #allocation8 [shape = 'u8[4096]{0}', space=vmem, size = 0x1000, scoped, tag = 'input window, operand 3, single buffered']
    #allocation9 [shape = 'u8[16384]{0}', space=vmem, size = 0x4000, scoped, tag = 'input window, operand 4, single buffered']
    #allocation10 [shape = 's32[1]{0}', space=sflag, size = 0x4, scoped, tag = 'scoped memory for tpu_custom_call.1']
    #allocation11 [shape = 'u8[65536]{0}', space=vmem, size = 0x10000, scoped, tag = 'input window, operand 5, single buffered']
    #allocation12 [shape = 'u8[65536]{0}', space=vmem, size = 0x10000, scoped, tag = 'input window, operand 6, single buffered']
    #allocation13 [shape = 's32[1]{0}', space=sflag, size = 0x4, scoped, tag = 'scoped memory for tpu_custom_call.1']
    #allocation14 [shape = 'u8[65536]{0}', space=vmem, size = 0x10000, scoped, tag = 'input window, operand 7, single buffered']
    #allocation15 [shape = 'u8[8192]{0}', space=vmem, size = 0x2000, scoped, tag = 'output window, operand 0, single buffered']
    %17 = vsyncpa [#allocation4], 0
    %18 = vsyncpa [#allocation7], 0
    %19 = vsyncpa [#allocation10], 0
    %20 = vsyncpa [#allocation13], 0
    %21 = vsyncpa [#allocation5], 0
    // Predicated region
    $region2: #{tpu_custom_call.1} parent=1 // pred_check
      _
    $region3: #{tpu_custom_call.1} parent=1 // pred_check_branch
      %23 = sbr.rel (0) target = $region5
    $region4: #{tpu_custom_call.1} parent=1 // pred_region
      _
    $region5: #{tpu_custom_call.1} parent=1 // pred_fallthru
      _
    // Predicated region
    $region6: #{tpu_custom_call.1} parent=1 // pred_check
      _
    $region7: #{tpu_custom_call.1} parent=1 // pred_check_branch
      %25 = sbr.rel (0) target = $region9
    $region8: #{tpu_custom_call.1} parent=1 // pred_region
      %s27 = ssub.s32 384, 384
      %28 = vsyncadd [#allocation4], %s27
      %s29 = sshll.u32 [#allocation3], 4
      %s30 = int_to_ptr.vmem [resolvable:$true] %s29
      %35 = dma.hbm_to_vmem [thread:$0]  %s1, 384, %s30, [#allocation4], 64, 64, 4
    $region9: #{tpu_custom_call.1} parent=1 // pred_fallthru
      _
    // Predicated region
    $region10: #{tpu_custom_call.1} parent=1 // pred_check
      _
    $region11: #{tpu_custom_call.1} parent=1 // pred_check_branch
      %37 = sbr.rel (0) target = $region13
    $region12: #{tpu_custom_call.1} parent=1 // pred_region
      %s39 = ssub.s32 256, 256
      %40 = vsyncadd [#allocation7], %s39
      %s41 = sshll.u32 [#allocation6], 4
      %s42 = int_to_ptr.vmem [resolvable:$true] %s41
      %47 = dma.hbm_to_vmem [thread:$0]  %s2, 256, %s42, [#allocation7], 64, 64, 4
    $region13: #{tpu_custom_call.1} parent=1 // pred_fallthru
      _
    // Predicated region
    $region14: #{tpu_custom_call.1} parent=1 // pred_check
      _
    $region15: #{tpu_custom_call.1} parent=1 // pred_check_branch
      %49 = sbr.rel (0) target = $region17
    $region16: #{tpu_custom_call.1} parent=1 // pred_region
      %s51 = ssub.s32 128, 128
      %52 = vsyncadd [#allocation7], %s51
      %s53 = sshll.u32 [#allocation8], 4
      %s54 = int_to_ptr.vmem [resolvable:$true] %s53
      %59 = dma.hbm_to_vmem [thread:$0]  %s3, 128, %s54, [#allocation7], 64, 64, 4
    $region17: #{tpu_custom_call.1} parent=1 // pred_fallthru
      _
    // Predicated region
    $region18: #{tpu_custom_call.1} parent=1 // pred_check
      _
    $region19: #{tpu_custom_call.1} parent=1 // pred_check_branch
      %61 = sbr.rel (0) target = $region21
    $region20: #{tpu_custom_call.1} parent=1 // pred_region
      %s63 = ssub.s32 512, 512
      %64 = vsyncadd [#allocation10], %s63
      %s65 = sshll.u32 [#allocation9], 4
      %s66 = int_to_ptr.vmem [resolvable:$true] %s65
      %71 = dma.hbm_to_vmem [thread:$0]  %s4, 512, %s66, [#allocation10], 64, 64, 4
    $region21: #{tpu_custom_call.1} parent=1 // pred_fallthru
      _
    // Predicated region
    $region22: #{tpu_custom_call.1} parent=1 // pred_check
      _
    $region23: #{tpu_custom_call.1} parent=1 // pred_check_branch
      %73 = sbr.rel (0) target = $region25
    $region24: #{tpu_custom_call.1} parent=1 // pred_region
      %s75 = ssub.s32 2048, 2048
      %76 = vsyncadd [#allocation10], %s75
      %s77 = sshll.u32 [#allocation11], 4
      %s78 = int_to_ptr.vmem [resolvable:$true] %s77
      %83 = dma.hbm_to_vmem [thread:$0]  %s5, 2048, %s78, [#allocation10], 64, 64, 4
    $region25: #{tpu_custom_call.1} parent=1 // pred_fallthru
      _
    // Predicated region
    $region26: #{tpu_custom_call.1} parent=1 // pred_check
      _
    $region27: #{tpu_custom_call.1} parent=1 // pred_check_branch
      %85 = sbr.rel (0) target = $region29
    $region28: #{tpu_custom_call.1} parent=1 // pred_region
      %s87 = ssub.s32 2048, 2048
      %88 = vsyncadd [#allocation13], %s87
      %s89 = sshll.u32 [#allocation12], 4
      %s90 = int_to_ptr.vmem [resolvable:$true] %s89
      %95 = dma.hbm_to_vmem [thread:$0]  %s6, 2048, %s90, [#allocation13], 64, 64, 4
    $region29: #{tpu_custom_call.1} parent=1 // pred_fallthru
      _
    // Predicated region
    $region30: #{tpu_custom_call.1} parent=1 // pred_check
      _
    $region31: #{tpu_custom_call.1} parent=1 // pred_check_branch
      %97 = sbr.rel (0) target = $region33
    $region32: #{tpu_custom_call.1} parent=1 // pred_region
      %s99 = ssub.s32 2048, 2048
      %100 = vsyncadd [#allocation13], %s99
      %s101 = sshll.u32 [#allocation14], 4
      %s102 = int_to_ptr.vmem [resolvable:$true] %s101
      %107 = dma.hbm_to_vmem [thread:$0]  %s7, 2048, %s102, [#allocation13], 64, 64, 4
    $region33: #{tpu_custom_call.1} parent=1 // pred_fallthru
      _
    // Predicated region
    $region34: #{tpu_custom_call.1} parent=1 // pred_check
      _
    $region35: #{tpu_custom_call.1} parent=1 // pred_check_branch
      %109 = sbr.rel (0) target = $region37
    $region36: #{tpu_custom_call.1} parent=1 // pred_region
      _
    $region37: #{tpu_custom_call.1} parent=1 // pred_fallthru
      _
    // Predicated region
    $region38: #{tpu_custom_call.1} parent=1 // pred_check
      _
    $region39: #{tpu_custom_call.1} parent=1 // pred_check_branch
      %111 = sbr.rel (0) target = $region41
    $region40: #{tpu_custom_call.1} parent=1 // pred_region
      _
    $region41: #{tpu_custom_call.1} parent=1 // pred_fallthru
      _
    // Predicated region
    $region42: #{tpu_custom_call.1} parent=1 // pred_check
      _
    $region43: #{tpu_custom_call.1} parent=1 // pred_check_branch
      %113 = sbr.rel (0) target = $region45
    $region44: #{tpu_custom_call.1} parent=1 // pred_region
      _
    $region45: #{tpu_custom_call.1} parent=1 // pred_fallthru
      _
    // Predicated region
    $region46: #{tpu_custom_call.1} parent=1 // pred_check
      _
    $region47: #{tpu_custom_call.1} parent=1 // pred_check_branch
      %115 = sbr.rel (0) target = $region49
    $region48: #{tpu_custom_call.1} parent=1 // pred_region
      %116 = dma.done [#allocation4], 384
    $region49: #{tpu_custom_call.1} parent=1 // pred_fallthru
      _
    // Predicated region
    $region50: #{tpu_custom_call.1} parent=1 // pred_check
      _
    $region51: #{tpu_custom_call.1} parent=1 // pred_check_branch
      %118 = sbr.rel (0) target = $region53
    $region52: #{tpu_custom_call.1} parent=1 // pred_region
      %119 = dma.done [#allocation7], 256
    $region53: #{tpu_custom_call.1} parent=1 // pred_fallthru
      _
    // Predicated region
    $region54: #{tpu_custom_call.1} parent=1 // pred_check
      _
    $region55: #{tpu_custom_call.1} parent=1 // pred_check_branch
      %121 = sbr.rel (0) target = $region57
    $region56: #{tpu_custom_call.1} parent=1 // pred_region
      %122 = dma.done [#allocation7], 128
    $region57: #{tpu_custom_call.1} parent=1 // pred_fallthru
      _
    // Predicated region
    $region58: #{tpu_custom_call.1} parent=1 // pred_check
      _
    $region59: #{tpu_custom_call.1} parent=1 // pred_check_branch
      %124 = sbr.rel (0) target = $region61
    $region60: #{tpu_custom_call.1} parent=1 // pred_region
      %125 = dma.done [#allocation10], 512
    $region61: #{tpu_custom_call.1} parent=1 // pred_fallthru
      _
    // Predicated region
    $region62: #{tpu_custom_call.1} parent=1 // pred_check
      _
    $region63: #{tpu_custom_call.1} parent=1 // pred_check_branch
      %127 = sbr.rel (0) target = $region65
    $region64: #{tpu_custom_call.1} parent=1 // pred_region
      %128 = dma.done [#allocation10], 2048
    $region65: #{tpu_custom_call.1} parent=1 // pred_fallthru
      _
    // Predicated region
    $region66: #{tpu_custom_call.1} parent=1 // pred_check
      _
    $region67: #{tpu_custom_call.1} parent=1 // pred_check_branch
      %130 = sbr.rel (0) target = $region69
    $region68: #{tpu_custom_call.1} parent=1 // pred_region
      %131 = dma.done [#allocation13], 2048
    $region69: #{tpu_custom_call.1} parent=1 // pred_fallthru
      _
    // Predicated region
    $region70: #{tpu_custom_call.1} parent=1 // pred_check
      _
    $region71: #{tpu_custom_call.1} parent=1 // pred_check_branch
      %133 = sbr.rel (0) target = $region73
    $region72: #{tpu_custom_call.1} parent=1 // pred_region
      %134 = dma.done [#allocation13], 2048
    $region73: #{tpu_custom_call.1} parent=1 // pred_fallthru
      _
    %s136 = sld [smem:[#allocation2]]
    %v137 = vld [vmem:[#allocation9] sm:$0xf]
    %v138 = vld [vmem:[#allocation9 + $0x4] sm:$0xf]
    %v139 = vld [vmem:[#allocation9 + $0x8] sm:$0xf]
    %v140 = vld [vmem:[#allocation9 + $0xc] sm:$0xf]
    %v141 = vld [vmem:[#allocation9 + $0x10] sm:$0xf]
    %v142 = vld [vmem:[#allocation9 + $0x14] sm:$0xf]
    %v143 = vld [vmem:[#allocation9 + $0x18] sm:$0xf]
    %v144 = vld [vmem:[#allocation9 + $0x1c] sm:$0xf]
    %v145 = vld [vmem:[#allocation3] sm:$0xf]
    %v146 = vld [vmem:[#allocation3 + $0x4] sm:$0xf]
    %v147 = vld [vmem:[#allocation3 + $0x8] sm:$0xf]
    %v148 = vld [vmem:[#allocation3 + $0xc] sm:$0xf]
    %v149 = vld [vmem:[#allocation3 + $0x10] sm:$0xf]
    %v150 = vld [vmem:[#allocation3 + $0x14] sm:$0xf]
    %v151 = vld [vmem:[#allocation11] sm:$0xf]
    %v152 = vld [vmem:[#allocation11 + $0x4] sm:$0xf]
    %v153 = vld [vmem:[#allocation11 + $0x8] sm:$0xf]
    %v154 = vld [vmem:[#allocation11 + $0xc] sm:$0xf]
    %v155 = vld [vmem:[#allocation11 + $0x10] sm:$0xf]
    %v156 = vld [vmem:[#allocation11 + $0x14] sm:$0xf]
    %v157 = vld [vmem:[#allocation11 + $0x18] sm:$0xf]
    %v158 = vld [vmem:[#allocation11 + $0x1c] sm:$0xf]
    %v159 = vld [vmem:[#allocation11 + $0x20] sm:$0xf]
    %v160 = vld [vmem:[#allocation11 + $0x24] sm:$0xf]
    %v161 = vld [vmem:[#allocation11 + $0x28] sm:$0xf]
    %v162 = vld [vmem:[#allocation11 + $0x2c] sm:$0xf]
    %v163 = vld [vmem:[#allocation11 + $0x30] sm:$0xf]
    %v164 = vld [vmem:[#allocation11 + $0x34] sm:$0xf]
    %v165 = vld [vmem:[#allocation11 + $0x38] sm:$0xf]
    %v166 = vld [vmem:[#allocation11 + $0x3c] sm:$0xf]
    %v167 = vld [vmem:[#allocation11 + $0x40] sm:$0xf]
    %v168 = vld [vmem:[#allocation11 + $0x44] sm:$0xf]
    %v169 = vld [vmem:[#allocation11 + $0x48] sm:$0xf]
    %v170 = vld [vmem:[#allocation11 + $0x4c] sm:$0xf]
    %v171 = vld [vmem:[#allocation11 + $0x50] sm:$0xf]
    %v172 = vld [vmem:[#allocation11 + $0x54] sm:$0xf]
    %v173 = vld [vmem:[#allocation11 + $0x58] sm:$0xf]
    %v174 = vld [vmem:[#allocation11 + $0x5c] sm:$0xf]
    %v175 = vld [vmem:[#allocation11 + $0x60] sm:$0xf]
    %v176 = vld [vmem:[#allocation11 + $0x64] sm:$0xf]
    %v177 = vld [vmem:[#allocation11 + $0x68] sm:$0xf]
    %v178 = vld [vmem:[#allocation11 + $0x6c] sm:$0xf]
    %v179 = vld [vmem:[#allocation11 + $0x70] sm:$0xf]
    %v180 = vld [vmem:[#allocation11 + $0x74] sm:$0xf]
    %v181 = vld [vmem:[#allocation11 + $0x78] sm:$0xf]
    %v182 = vld [vmem:[#allocation11 + $0x7c] sm:$0xf]
    %v183 = vld [vmem:[%s8] sm:$0x1]
    %v190 = vunpack.c.l.b16 %v145
    %v191 = vunpack.c.l.b16 %v146
    %v192 = vunpack.c.l.b16 %v147
    %v193 = vunpack.c.l.b16 %v148
    %v194 = vunpack.c.l.b16 %v149
    %v195 = vunpack.c.l.b16 %v150
    %v196 = vpack.c.b16 %v191, %v190
    %v197 = vpack.c.b16 %v193, %v192
    %v198 = vpack.c.b16 %v195, %v194
    %v207 = vunpack.c.l.b16 %v137
    %v208 = vunpack.c.l.b16 %v138
    %v209 = vunpack.c.l.b16 %v139
    %v210 = vunpack.c.l.b16 %v140
    %v211 = vunpack.c.l.b16 %v141
    %v212 = vunpack.c.l.b16 %v142
    %v213 = vunpack.c.l.b16 %v143
    %v214 = vunpack.c.l.b16 %v144
    %v215 = vpack.c.b16 %v208, %v207
    %v216 = vpack.c.b16 %v210, %v209
    %v217 = vpack.c.b16 %v212, %v211
    %v218 = vpack.c.b16 %v214, %v213
    %vm223 = vcmask 523264
    %v225 = vsel %vm223, %v196, 0
    %v228 = vsel %vm223, %v197, 0
    %v231 = vsel %vm223, %v198, 0
    %233 = vmatprep.subr.bf16.mxu0 0
    %234 = vmatpush1.bf16.msra.mxu0 0
    %235 = vmatprep.subr.bf16.mxu0 0
    %236 = vmatpush1.bf16.msra.mxu0 0
    %237 = vmatprep.subr.bf16.mxu0 0
    %238 = vmatpush1.bf16.msra.mxu0 0
    %239 = vmatprep.subr.bf16.mxu0 0
    %240 = vmatpush1.bf16.msra.mxu0 0
    %241 = vmatprep.subr.bf16.mxu0 0
    %242 = vmatpush1.bf16.msra.mxu0 %v218
    %243 = vmatprep.subr.bf16.mxu0 0
    %244 = vmatpush1.bf16.msra.mxu0 %v217
    %245 = vmatprep.subr.bf16.mxu0 0
    %246 = vmatpush1.bf16.msra.mxu0 %v216
    %247 = vmatprep.subr.bf16.mxu0 0
    %248 = vmatpush1.bf16.msra.mxu0 %v215
    %249 = vmatprep.subr.bf16.mxu0 0
    %250 = vmatpush2.bf16.msra.mxu0 0
    %251 = vmatprep.subr.bf16.mxu0 0
    %252 = vmatpush2.bf16.msra.mxu0 0
    %253 = vmatprep.subr.bf16.mxu0 0
    %254 = vmatpush2.bf16.msra.mxu0 0
    %255 = vmatprep.subr.bf16.mxu0 0
    %256 = vmatpush2.bf16.msra.mxu0 0
    %257 = vmatprep.subr.bf16.mxu0 0
    %258 = vmatpush2.bf16.msra.mxu0 0
    %259 = vmatprep.subr.bf16.mxu0 0
    %260 = vmatpush2.bf16.msra.mxu0 0
    %261 = vmatprep.subr.bf16.mxu0 0
    %262 = vmatpush2.bf16.msra.mxu0 0
    %263 = vmatprep.subr.bf16.mxu0 0
    %264 = vmatpush2.bf16.msra.mxu0 0
    %265 = vmatprep.mubr.bf16.mxu0 0
    %266 = vmatmul.mubr.bf16.gmra.mxu0 %v225
    %v267 = vpop.f32.mrf.mxu0
    %v268 = vadd.f32 0.0, %v267
    %v269 = vpop.f32.mrf.mxu0
    %v270 = vpop.f32.mrf.mxu0
    %v271 = vadd.f32 0.0, %v270
    %v272 = vpop.f32.mrf.mxu0
    %273 = vmatprep.mubr.bf16.mxu0 0
    %274 = vmatmul.mubr.bf16.gmra.mxu0 %v228
    %v275 = vpop.f32.mrf.mxu0
    %v276 = vadd.f32 0.0, %v275
    %v277 = vpop.f32.mrf.mxu0
    %v278 = vpop.f32.mrf.mxu0
    %v279 = vadd.f32 0.0, %v278
    %v280 = vpop.f32.mrf.mxu0
    %281 = vmatprep.mubr.bf16.mxu0 0
    %282 = vmatmul.mubr.bf16.gmra.mxu0 %v231
    %v283 = vpop.f32.mrf.mxu0
    %v284 = vadd.f32 0.0, %v283
    %v285 = vpop.f32.mrf.mxu0
    %v286 = vpop.f32.mrf.mxu0
    %v287 = vadd.f32 0.0, %v286
    %v288 = vpop.f32.mrf.mxu0
    %289 = vdwg.mxu0
    %v290 = vpack.c.bf16 %v271, %v268
    %v291 = vpack.c.bf16 %v279, %v276
    %v292 = vpack.c.bf16 %v287, %v284
    %v294 = vlaneseq
    %v295 = vshrl.u32 %v294, 7
    %v296 = vsub.s32 0, %v295
    %v297 = vrot.slane %v183, %v296
    %v331 = vunpack.c.l.b16 %v151
    %v332 = vunpack.c.l.b16 %v152
    %v333 = vunpack.c.l.b16 %v153
    %v334 = vunpack.c.l.b16 %v154
    %v335 = vunpack.c.l.b16 %v155
    %v336 = vunpack.c.l.b16 %v156
    %v337 = vunpack.c.l.b16 %v157
    %v338 = vunpack.c.l.b16 %v158
    %v339 = vunpack.c.l.b16 %v159
    %v340 = vunpack.c.l.b16 %v160
    %v341 = vunpack.c.l.b16 %v161
    %v342 = vunpack.c.l.b16 %v162
    %v343 = vunpack.c.l.b16 %v163
    %v344 = vunpack.c.l.b16 %v164
    %v345 = vunpack.c.l.b16 %v165
    %v346 = vunpack.c.l.b16 %v166
    %v347 = vunpack.c.l.b16 %v167
    %v348 = vunpack.c.l.b16 %v168
    %v349 = vunpack.c.l.b16 %v169
    %v350 = vunpack.c.l.b16 %v170
    %v351 = vunpack.c.l.b16 %v171
    %v352 = vunpack.c.l.b16 %v172
    %v353 = vunpack.c.l.b16 %v173
    %v354 = vunpack.c.l.b16 %v174
    %v355 = vunpack.c.l.b16 %v175
    %v356 = vunpack.c.l.b16 %v176
    %v357 = vunpack.c.l.b16 %v177
    %v358 = vunpack.c.l.b16 %v178
    %v359 = vunpack.c.l.b16 %v179
    %v360 = vunpack.c.l.b16 %v180
    %v361 = vunpack.c.l.b16 %v181
    %v362 = vunpack.c.l.b16 %v182
    %v363 = vpack.c.b16 %v332, %v331
    %v364 = vpack.c.b16 %v334, %v333
    %v365 = vpack.c.b16 %v336, %v335
    %v366 = vpack.c.b16 %v338, %v337
    %v367 = vpack.c.b16 %v340, %v339
    %v368 = vpack.c.b16 %v342, %v341
    %v369 = vpack.c.b16 %v344, %v343
    %v370 = vpack.c.b16 %v346, %v345
    %v371 = vpack.c.b16 %v348, %v347
    %v372 = vpack.c.b16 %v350, %v349
    %v373 = vpack.c.b16 %v352, %v351
    %v374 = vpack.c.b16 %v354, %v353
    %v375 = vpack.c.b16 %v356, %v355
    %v376 = vpack.c.b16 %v358, %v357
    %v377 = vpack.c.b16 %v360, %v359
    %v378 = vpack.c.b16 %v362, %v361
    %395 = vmatprep.subr.bf16.mxu0 0
    %396 = vmatpush1.bf16.msra.mxu0 %v370
    %397 = vmatprep.subr.bf16.mxu0 0
    %398 = vmatpush1.bf16.msra.mxu0 %v369
    %399 = vmatprep.subr.bf16.mxu0 0
    %400 = vmatpush1.bf16.msra.mxu0 %v368
    %401 = vmatprep.subr.bf16.mxu0 0
    %402 = vmatpush1.bf16.msra.mxu0 %v367
    %403 = vmatprep.subr.bf16.mxu0 0
    %404 = vmatpush1.bf16.msra.mxu0 %v366
    %405 = vmatprep.subr.bf16.mxu0 0
    %406 = vmatpush1.bf16.msra.mxu0 %v365
    %407 = vmatprep.subr.bf16.mxu0 0
    %408 = vmatpush1.bf16.msra.mxu0 %v364
    %409 = vmatprep.subr.bf16.mxu0 0
    %410 = vmatpush1.bf16.msra.mxu0 %v363
    %411 = vmatprep.subr.bf16.mxu0 0
    %412 = vmatpush2.bf16.msra.mxu0 %v378
    %413 = vmatprep.subr.bf16.mxu0 0
    %414 = vmatpush2.bf16.msra.mxu0 %v377
    %415 = vmatprep.subr.bf16.mxu0 0
    %416 = vmatpush2.bf16.msra.mxu0 %v376
    %417 = vmatprep.subr.bf16.mxu0 0
    %418 = vmatpush2.bf16.msra.mxu0 %v375
    %419 = vmatprep.subr.bf16.mxu0 0
    %420 = vmatpush2.bf16.msra.mxu0 %v374
    %421 = vmatprep.subr.bf16.mxu0 0
    %422 = vmatpush2.bf16.msra.mxu0 %v373
    %423 = vmatprep.subr.bf16.mxu0 0
    %424 = vmatpush2.bf16.msra.mxu0 %v372
    %425 = vmatprep.subr.bf16.mxu0 0
    %426 = vmatpush2.bf16.msra.mxu0 %v371
    %427 = vmatprep.mubr.bf16.mxu0 %v290
    %428 = vmatmul.mubr.bf16.gmra.mxu0 %v215
    %v429 = vpop.f32.mrf.mxu0
    %v430 = vadd.f32 %v297, %v429
    %v431 = vpop.f32.mrf.mxu0
    %v432 = vpop.f32.mrf.mxu0
    %v433 = vadd.f32 %v297, %v432
    %v434 = vpop.f32.mrf.mxu0
    %435 = vmatprep.mubr.bf16.mxu0 %v291
    %436 = vmatmul.mubr.bf16.gmra.mxu0 %v216
    %v437 = vpop.f32.mrf.mxu0
    %v438 = vadd.f32 %v297, %v437
    %v439 = vpop.f32.mrf.mxu0
    %v440 = vpop.f32.mrf.mxu0
    %v441 = vadd.f32 %v297, %v440
    %v442 = vpop.f32.mrf.mxu0
    %443 = vmatprep.mubr.bf16.mxu0 %v292
    %444 = vmatmul.mubr.bf16.gmra.mxu0 %v217
    %v445 = vpop.f32.mrf.mxu0
    %v446 = vadd.f32 %v297, %v445
    %v447 = vpop.f32.mrf.mxu0
    %v448 = vpop.f32.mrf.mxu0
    %v449 = vadd.f32 %v297, %v448
    %v450 = vpop.f32.mrf.mxu0
    %451 = vdwg.mxu0
    %v452 = vmax.f32 %v430, 0.0
    %v453 = vmax.f32 %v433, 0.0
    %v454 = vmax.f32 %v438, 0.0
    %v455 = vmax.f32 %v441, 0.0
    %v456 = vmax.f32 %v446, 0.0
    %v457 = vmax.f32 %v449, 0.0
    %v458 = vlaneseq
    %v459 = vshrl.u32 %v458, 7
    %v460 = vadd.s32 %v459, 8
    %v461 = vadd.s32 %v459, 16
    %v462 = vadd.s32 %v459, 24
    %v463 = vadd.s32 %v459, 32
    %v464 = vadd.s32 %v459, 40
    %v465 = vlaneseq
    %v466 = vand.u32 %v465, 127
    %v467 = vmul.u32 %v459, 12582917
    %v468 = vmul.u32 %v460, 12582917
    %v469 = vmul.u32 %v461, 12582917
    %v470 = vmul.u32 %v462, 12582917
    %v471 = vmul.u32 %v463, 12582917
    %v472 = vmul.u32 %v464, 12582917
    %v473 = vstv %s136
    %v474 = vadd.s32 %v473, %v467
    %v475 = vadd.s32 %v473, %v468
    %v476 = vadd.s32 %v473, %v469
    %v477 = vadd.s32 %v473, %v470
    %v478 = vadd.s32 %v473, %v471
    %v479 = vadd.s32 %v473, %v472
    %v480 = vmul.u32 %v466, 28629151
    %v481 = vadd.s32 %v474, %v480
    %v482 = vadd.s32 %v475, %v480
    %v483 = vadd.s32 %v476, %v480
    %v484 = vadd.s32 %v477, %v480
    %v485 = vadd.s32 %v478, %v480
    %v486 = vadd.s32 %v479, %v480
    %v487 = vshra.s32 %v481, 16
    %v488 = vshra.s32 %v482, 16
    %v489 = vshra.s32 %v483, 16
    %v490 = vshra.s32 %v484, 16
    %v491 = vshra.s32 %v485, 16
    %v492 = vshra.s32 %v486, 16
    %v493 = vxor.u32 %v481, %v487
    %v494 = vxor.u32 %v482, %v488
    %v495 = vxor.u32 %v483, %v489
    %v496 = vxor.u32 %v484, %v490
    %v497 = vxor.u32 %v485, %v491
    %v498 = vxor.u32 %v486, %v492
    %v499 = vmul.u32 %v493, 73244475
    %v500 = vmul.u32 %v494, 73244475
    %v501 = vmul.u32 %v495, 73244475
    %v502 = vmul.u32 %v496, 73244475
    %v503 = vmul.u32 %v497, 73244475
    %v504 = vmul.u32 %v498, 73244475
    %v505 = vshra.s32 %v499, 16
    %v506 = vshra.s32 %v500, 16
    %v507 = vshra.s32 %v501, 16
    %v508 = vshra.s32 %v502, 16
    %v509 = vshra.s32 %v503, 16
    %v510 = vshra.s32 %v504, 16
    %v511 = vxor.u32 %v499, %v505
    %v512 = vxor.u32 %v500, %v506
    %v513 = vxor.u32 %v501, %v507
    %v514 = vxor.u32 %v502, %v508
    %v515 = vxor.u32 %v503, %v509
    %v516 = vxor.u32 %v504, %v510
    %v517 = vmul.u32 %v511, 73244475
    %v518 = vmul.u32 %v512, 73244475
    %v519 = vmul.u32 %v513, 73244475
    %v520 = vmul.u32 %v514, 73244475
    %v521 = vmul.u32 %v515, 73244475
    %v522 = vmul.u32 %v516, 73244475
    %v523 = vshra.s32 %v517, 16
    %v524 = vshra.s32 %v518, 16
    %v525 = vshra.s32 %v519, 16
    %v526 = vshra.s32 %v520, 16
    %v527 = vshra.s32 %v521, 16
    %v528 = vshra.s32 %v522, 16
    %v529 = vxor.u32 %v517, %v523
    %v530 = vxor.u32 %v518, %v524
    %v531 = vxor.u32 %v519, %v525
    %v532 = vxor.u32 %v520, %v526
    %v533 = vxor.u32 %v521, %v527
    %v534 = vxor.u32 %v522, %v528
    %v535 = vand.u32 %v529, 1
    %v536 = vand.u32 %v530, 1
    %v537 = vand.u32 %v531, 1
    %v538 = vand.u32 %v532, 1
    %v539 = vand.u32 %v533, 1
    %v540 = vand.u32 %v534, 1
    %vm541 = vcmp.eq.s32.totalorder %v535, 0
    %vm542 = vcmp.eq.s32.totalorder %v536, 0
    %vm543 = vcmp.eq.s32.totalorder %v537, 0
    %vm544 = vcmp.eq.s32.totalorder %v538, 0
    %vm545 = vcmp.eq.s32.totalorder %v539, 0
    %vm546 = vcmp.eq.s32.totalorder %v540, 0
    %v547 = vmul.f32 %v452, 2.0
    %v548 = vmul.f32 %v453, 2.0
    %v549 = vmul.f32 %v454, 2.0
    %v550 = vmul.f32 %v455, 2.0
    %v551 = vmul.f32 %v456, 2.0
    %v552 = vmul.f32 %v457, 2.0
    %v553 = vsel %vm541, %v547, 0.0
    %v554 = vsel %vm542, %v548, 0.0
    %v555 = vsel %vm543, %v549, 0.0
    %v556 = vsel %vm544, %v550, 0.0
    %v557 = vsel %vm545, %v551, 0.0
    %v558 = vsel %vm546, %v552, 0.0
    %v559 = vld [vmem:[#allocation6] sm:$0xf]
    %v560 = vld [vmem:[#allocation6 + $0x4] sm:$0xf]
    %v561 = vld [vmem:[#allocation6 + $0x8] sm:$0xf]
    %v562 = vld [vmem:[#allocation6 + $0xc] sm:$0xf]
    %v563 = vld [vmem:[#allocation12] sm:$0xf]
    %v564 = vld [vmem:[#allocation12 + $0x4] sm:$0xf]
    %v565 = vld [vmem:[#allocation12 + $0x8] sm:$0xf]
    %v566 = vld [vmem:[#allocation12 + $0xc] sm:$0xf]
    %v567 = vld [vmem:[#allocation12 + $0x10] sm:$0xf]
    %v568 = vld [vmem:[#allocation12 + $0x14] sm:$0xf]
    %v569 = vld [vmem:[#allocation12 + $0x18] sm:$0xf]
    %v570 = vld [vmem:[#allocation12 + $0x1c] sm:$0xf]
    %v571 = vld [vmem:[#allocation12 + $0x20] sm:$0xf]
    %v572 = vld [vmem:[#allocation12 + $0x24] sm:$0xf]
    %v573 = vld [vmem:[#allocation12 + $0x28] sm:$0xf]
    %v574 = vld [vmem:[#allocation12 + $0x2c] sm:$0xf]
    %v575 = vld [vmem:[#allocation12 + $0x30] sm:$0xf]
    %v576 = vld [vmem:[#allocation12 + $0x34] sm:$0xf]
    %v577 = vld [vmem:[#allocation12 + $0x38] sm:$0xf]
    %v578 = vld [vmem:[#allocation12 + $0x3c] sm:$0xf]
    %v579 = vld [vmem:[#allocation12 + $0x40] sm:$0xf]
    %v580 = vld [vmem:[#allocation12 + $0x44] sm:$0xf]
    %v581 = vld [vmem:[#allocation12 + $0x48] sm:$0xf]
    %v582 = vld [vmem:[#allocation12 + $0x4c] sm:$0xf]
    %v583 = vld [vmem:[#allocation12 + $0x50] sm:$0xf]
    %v584 = vld [vmem:[#allocation12 + $0x54] sm:$0xf]
    %v585 = vld [vmem:[#allocation12 + $0x58] sm:$0xf]
    %v586 = vld [vmem:[#allocation12 + $0x5c] sm:$0xf]
    %v587 = vld [vmem:[#allocation12 + $0x60] sm:$0xf]
    %v588 = vld [vmem:[#allocation12 + $0x64] sm:$0xf]
    %v589 = vld [vmem:[#allocation12 + $0x68] sm:$0xf]
    %v590 = vld [vmem:[#allocation12 + $0x6c] sm:$0xf]
    %v591 = vld [vmem:[#allocation12 + $0x70] sm:$0xf]
    %v592 = vld [vmem:[#allocation12 + $0x74] sm:$0xf]
    %v593 = vld [vmem:[#allocation12 + $0x78] sm:$0xf]
    %v594 = vld [vmem:[#allocation12 + $0x7c] sm:$0xf]
    %v595 = vld [vmem:[%s9] sm:$0x1]
    %s596 = sadd.s32 %s136, 1000003
    %v597 = vpack.c.bf16 %v554, %v553
    %v598 = vpack.c.bf16 %v556, %v555
    %v599 = vpack.c.bf16 %v558, %v557
    %v604 = vunpack.c.l.b16 %v559
    %v605 = vunpack.c.l.b16 %v560
    %v606 = vunpack.c.l.b16 %v561
    %v607 = vunpack.c.l.b16 %v562
    %v608 = vpack.c.b16 %v605, %v604
    %v609 = vpack.c.b16 %v607, %v606
    %vm610 = vcmask 392192
    %v612 = vsel %vm610, %v608, 0
    %v615 = vsel %vm610, %v609, 0
    %617 = vmatprep.subr.bf16.mxu0 0
    %618 = vmatpush1.bf16.msra.mxu0 0
    %619 = vmatprep.subr.bf16.mxu0 0
    %620 = vmatpush1.bf16.msra.mxu0 0
    %621 = vmatprep.subr.bf16.mxu0 0
    %622 = vmatpush1.bf16.msra.mxu0 0
    %623 = vmatprep.subr.bf16.mxu0 0
    %624 = vmatpush1.bf16.msra.mxu0 0
    %625 = vmatprep.subr.bf16.mxu0 0
    %626 = vmatpush1.bf16.msra.mxu0 0
    %627 = vmatprep.subr.bf16.mxu0 0
    %628 = vmatpush1.bf16.msra.mxu0 %v599
    %629 = vmatprep.subr.bf16.mxu0 0
    %630 = vmatpush1.bf16.msra.mxu0 %v598
    %631 = vmatprep.subr.bf16.mxu0 0
    %632 = vmatpush1.bf16.msra.mxu0 %v597
    %633 = vmatprep.subr.bf16.mxu0 0
    %634 = vmatpush2.bf16.msra.mxu0 0
    %635 = vmatprep.subr.bf16.mxu0 0
    %636 = vmatpush2.bf16.msra.mxu0 0
    %637 = vmatprep.subr.bf16.mxu0 0
    %638 = vmatpush2.bf16.msra.mxu0 0
    %639 = vmatprep.subr.bf16.mxu0 0
    %640 = vmatpush2.bf16.msra.mxu0 0
    %641 = vmatprep.subr.bf16.mxu0 0
    %642 = vmatpush2.bf16.msra.mxu0 0
    %643 = vmatprep.subr.bf16.mxu0 0
    %644 = vmatpush2.bf16.msra.mxu0 0
    %645 = vmatprep.subr.bf16.mxu0 0
    %646 = vmatpush2.bf16.msra.mxu0 0
    %647 = vmatprep.subr.bf16.mxu0 0
    %648 = vmatpush2.bf16.msra.mxu0 0
    %649 = vmatprep.mubr.bf16.mxu0 0
    %650 = vmatmul.mubr.bf16.gmra.mxu0 %v612
    %v651 = vpop.f32.mrf.mxu0
    %v652 = vadd.f32 0.0, %v651
    %v653 = vpop.f32.mrf.mxu0
    %v654 = vpop.f32.mrf.mxu0
    %v655 = vadd.f32 0.0, %v654
    %v656 = vpop.f32.mrf.mxu0
    %657 = vmatprep.mubr.bf16.mxu0 0
    %658 = vmatmul.mubr.bf16.gmra.mxu0 %v615
    %v659 = vpop.f32.mrf.mxu0
    %v660 = vadd.f32 0.0, %v659
    %v661 = vpop.f32.mrf.mxu0
    %v662 = vpop.f32.mrf.mxu0
    %v663 = vadd.f32 0.0, %v662
    %v664 = vpop.f32.mrf.mxu0
    %665 = vdwg.mxu0
    %v666 = vpack.c.bf16 %v655, %v652
    %v667 = vpack.c.bf16 %v663, %v660
    %v669 = vlaneseq
    %v670 = vshrl.u32 %v669, 7
    %v671 = vsub.s32 0, %v670
    %v672 = vrot.slane %v595, %v671
    %v706 = vunpack.c.l.b16 %v563
    %v707 = vunpack.c.l.b16 %v564
    %v708 = vunpack.c.l.b16 %v565
    %v709 = vunpack.c.l.b16 %v566
    %v710 = vunpack.c.l.b16 %v567
    %v711 = vunpack.c.l.b16 %v568
    %v712 = vunpack.c.l.b16 %v569
    %v713 = vunpack.c.l.b16 %v570
    %v714 = vunpack.c.l.b16 %v571
    %v715 = vunpack.c.l.b16 %v572
    %v716 = vunpack.c.l.b16 %v573
    %v717 = vunpack.c.l.b16 %v574
    %v718 = vunpack.c.l.b16 %v575
    %v719 = vunpack.c.l.b16 %v576
    %v720 = vunpack.c.l.b16 %v577
    %v721 = vunpack.c.l.b16 %v578
    %v722 = vunpack.c.l.b16 %v579
    %v723 = vunpack.c.l.b16 %v580
    %v724 = vunpack.c.l.b16 %v581
    %v725 = vunpack.c.l.b16 %v582
    %v726 = vunpack.c.l.b16 %v583
    %v727 = vunpack.c.l.b16 %v584
    %v728 = vunpack.c.l.b16 %v585
    %v729 = vunpack.c.l.b16 %v586
    %v730 = vunpack.c.l.b16 %v587
    %v731 = vunpack.c.l.b16 %v588
    %v732 = vunpack.c.l.b16 %v589
    %v733 = vunpack.c.l.b16 %v590
    %v734 = vunpack.c.l.b16 %v591
    %v735 = vunpack.c.l.b16 %v592
    %v736 = vunpack.c.l.b16 %v593
    %v737 = vunpack.c.l.b16 %v594
    %v738 = vpack.c.b16 %v707, %v706
    %v739 = vpack.c.b16 %v709, %v708
    %v740 = vpack.c.b16 %v711, %v710
    %v741 = vpack.c.b16 %v713, %v712
    %v742 = vpack.c.b16 %v715, %v714
    %v743 = vpack.c.b16 %v717, %v716
    %v744 = vpack.c.b16 %v719, %v718
    %v745 = vpack.c.b16 %v721, %v720
    %v746 = vpack.c.b16 %v723, %v722
    %v747 = vpack.c.b16 %v725, %v724
    %v748 = vpack.c.b16 %v727, %v726
    %v749 = vpack.c.b16 %v729, %v728
    %v750 = vpack.c.b16 %v731, %v730
    %v751 = vpack.c.b16 %v733, %v732
    %v752 = vpack.c.b16 %v735, %v734
    %v753 = vpack.c.b16 %v737, %v736
    %770 = vmatprep.subr.bf16.mxu0 0
    %771 = vmatpush1.bf16.msra.mxu0 %v745
    %772 = vmatprep.subr.bf16.mxu0 0
    %773 = vmatpush1.bf16.msra.mxu0 %v744
    %774 = vmatprep.subr.bf16.mxu0 0
    %775 = vmatpush1.bf16.msra.mxu0 %v743
    %776 = vmatprep.subr.bf16.mxu0 0
    %777 = vmatpush1.bf16.msra.mxu0 %v742
    %778 = vmatprep.subr.bf16.mxu0 0
    %779 = vmatpush1.bf16.msra.mxu0 %v741
    %780 = vmatprep.subr.bf16.mxu0 0
    %781 = vmatpush1.bf16.msra.mxu0 %v740
    %782 = vmatprep.subr.bf16.mxu0 0
    %783 = vmatpush1.bf16.msra.mxu0 %v739
    %784 = vmatprep.subr.bf16.mxu0 0
    %785 = vmatpush1.bf16.msra.mxu0 %v738
    %786 = vmatprep.subr.bf16.mxu0 0
    %787 = vmatpush2.bf16.msra.mxu0 %v753
    %788 = vmatprep.subr.bf16.mxu0 0
    %789 = vmatpush2.bf16.msra.mxu0 %v752
    %790 = vmatprep.subr.bf16.mxu0 0
    %791 = vmatpush2.bf16.msra.mxu0 %v751
    %792 = vmatprep.subr.bf16.mxu0 0
    %793 = vmatpush2.bf16.msra.mxu0 %v750
    %794 = vmatprep.subr.bf16.mxu0 0
    %795 = vmatpush2.bf16.msra.mxu0 %v749
    %796 = vmatprep.subr.bf16.mxu0 0
    %797 = vmatpush2.bf16.msra.mxu0 %v748
    %798 = vmatprep.subr.bf16.mxu0 0
    %799 = vmatpush2.bf16.msra.mxu0 %v747
    %800 = vmatprep.subr.bf16.mxu0 0
    %801 = vmatpush2.bf16.msra.mxu0 %v746
    %802 = vmatprep.mubr.bf16.mxu0 %v666
    %803 = vmatmul.mubr.bf16.gmra.mxu0 %v597
    %v804 = vpop.f32.mrf.mxu0
    %v805 = vadd.f32 %v672, %v804
    %v806 = vpop.f32.mrf.mxu0
    %v807 = vpop.f32.mrf.mxu0
    %v808 = vadd.f32 %v672, %v807
    %v809 = vpop.f32.mrf.mxu0
    %810 = vmatprep.mubr.bf16.mxu0 %v667
    %811 = vmatmul.mubr.bf16.gmra.mxu0 %v598
    %v812 = vpop.f32.mrf.mxu0
    %v813 = vadd.f32 %v672, %v812
    %v814 = vpop.f32.mrf.mxu0
    %v815 = vpop.f32.mrf.mxu0
    %v816 = vadd.f32 %v672, %v815
    %v817 = vpop.f32.mrf.mxu0
    %818 = vdwg.mxu0
    %v819 = vmax.f32 %v805, 0.0
    %v820 = vmax.f32 %v808, 0.0
    %v821 = vmax.f32 %v813, 0.0
    %v822 = vmax.f32 %v816, 0.0
    %v823 = vstv %s596
    %v824 = vadd.s32 %v823, %v467
    %v825 = vadd.s32 %v823, %v468
    %v826 = vadd.s32 %v823, %v469
    %v827 = vadd.s32 %v823, %v470
    %v828 = vadd.s32 %v824, %v480
    %v829 = vadd.s32 %v825, %v480
    %v830 = vadd.s32 %v826, %v480
    %v831 = vadd.s32 %v827, %v480
    %v832 = vshra.s32 %v828, 16
    %v833 = vshra.s32 %v829, 16
    %v834 = vshra.s32 %v830, 16
    %v835 = vshra.s32 %v831, 16
    %v836 = vxor.u32 %v828, %v832
    %v837 = vxor.u32 %v829, %v833
    %v838 = vxor.u32 %v830, %v834
    %v839 = vxor.u32 %v831, %v835
    %v840 = vmul.u32 %v836, 73244475
    %v841 = vmul.u32 %v837, 73244475
    %v842 = vmul.u32 %v838, 73244475
    %v843 = vmul.u32 %v839, 73244475
    %v844 = vshra.s32 %v840, 16
    %v845 = vshra.s32 %v841, 16
    %v846 = vshra.s32 %v842, 16
    %v847 = vshra.s32 %v843, 16
    %v848 = vxor.u32 %v840, %v844
    %v849 = vxor.u32 %v841, %v845
    %v850 = vxor.u32 %v842, %v846
    %v851 = vxor.u32 %v843, %v847
    %v852 = vmul.u32 %v848, 73244475
    %v853 = vmul.u32 %v849, 73244475
    %v854 = vmul.u32 %v850, 73244475
    %v855 = vmul.u32 %v851, 73244475
    %v856 = vshra.s32 %v852, 16
    %v857 = vshra.s32 %v853, 16
    %v858 = vshra.s32 %v854, 16
    %v859 = vshra.s32 %v855, 16
    %v860 = vxor.u32 %v852, %v856
    %v861 = vxor.u32 %v853, %v857
    %v862 = vxor.u32 %v854, %v858
    %v863 = vxor.u32 %v855, %v859
    %v864 = vand.u32 %v860, 1
    %v865 = vand.u32 %v861, 1
    %v866 = vand.u32 %v862, 1
    %v867 = vand.u32 %v863, 1
    %vm868 = vcmp.eq.s32.totalorder %v864, 0
    %vm869 = vcmp.eq.s32.totalorder %v865, 0
    %vm870 = vcmp.eq.s32.totalorder %v866, 0
    %vm871 = vcmp.eq.s32.totalorder %v867, 0
    %v872 = vmul.f32 %v819, 2.0
    %v873 = vmul.f32 %v820, 2.0
    %v874 = vmul.f32 %v821, 2.0
    %v875 = vmul.f32 %v822, 2.0
    %v876 = vsel %vm868, %v872, 0.0
    %v877 = vsel %vm869, %v873, 0.0
    %v878 = vsel %vm870, %v874, 0.0
    %v879 = vsel %vm871, %v875, 0.0
    %v880 = vld [vmem:[#allocation8] sm:$0xf]
    %v881 = vld [vmem:[#allocation8 + $0x4] sm:$0xf]
    %v882 = vld [vmem:[#allocation14] sm:$0xf]
    %v883 = vld [vmem:[#allocation14 + $0x4] sm:$0xf]
    %v884 = vld [vmem:[#allocation14 + $0x8] sm:$0xf]
    %v885 = vld [vmem:[#allocation14 + $0xc] sm:$0xf]
    %v886 = vld [vmem:[#allocation14 + $0x10] sm:$0xf]
    %v887 = vld [vmem:[#allocation14 + $0x14] sm:$0xf]
    %v888 = vld [vmem:[#allocation14 + $0x18] sm:$0xf]
    %v889 = vld [vmem:[#allocation14 + $0x1c] sm:$0xf]
    %v890 = vld [vmem:[#allocation14 + $0x20] sm:$0xf]
    %v891 = vld [vmem:[#allocation14 + $0x24] sm:$0xf]
    %v892 = vld [vmem:[#allocation14 + $0x28] sm:$0xf]
    %v893 = vld [vmem:[#allocation14 + $0x2c] sm:$0xf]
    %v894 = vld [vmem:[#allocation14 + $0x30] sm:$0xf]
    %v895 = vld [vmem:[#allocation14 + $0x34] sm:$0xf]
    %v896 = vld [vmem:[#allocation14 + $0x38] sm:$0xf]
    %v897 = vld [vmem:[#allocation14 + $0x3c] sm:$0xf]
    %v898 = vld [vmem:[#allocation14 + $0x40] sm:$0xf]
    %v899 = vld [vmem:[#allocation14 + $0x44] sm:$0xf]
    %v900 = vld [vmem:[#allocation14 + $0x48] sm:$0xf]
    %v901 = vld [vmem:[#allocation14 + $0x4c] sm:$0xf]
    %v902 = vld [vmem:[#allocation14 + $0x50] sm:$0xf]
    %v903 = vld [vmem:[#allocation14 + $0x54] sm:$0xf]
    %v904 = vld [vmem:[#allocation14 + $0x58] sm:$0xf]
    %v905 = vld [vmem:[#allocation14 + $0x5c] sm:$0xf]
    %v906 = vld [vmem:[#allocation14 + $0x60] sm:$0xf]
    %v907 = vld [vmem:[#allocation14 + $0x64] sm:$0xf]
    %v908 = vld [vmem:[#allocation14 + $0x68] sm:$0xf]
    %v909 = vld [vmem:[#allocation14 + $0x6c] sm:$0xf]
    %v910 = vld [vmem:[#allocation14 + $0x70] sm:$0xf]
    %v911 = vld [vmem:[#allocation14 + $0x74] sm:$0xf]
    %v912 = vld [vmem:[#allocation14 + $0x78] sm:$0xf]
    %v913 = vld [vmem:[#allocation14 + $0x7c] sm:$0xf]
    %v914 = vld [vmem:[%s10] sm:$0x1]
    %v915 = vpack.c.bf16 %v877, %v876
    %v916 = vpack.c.bf16 %v879, %v878
    %v919 = vunpack.c.l.b16 %v880
    %v920 = vunpack.c.l.b16 %v881
    %v921 = vpack.c.b16 %v920, %v919
    %vm922 = vcmask 261120
    %v924 = vsel %vm922, %v921, 0
    %926 = vmatprep.subr.bf16.mxu0 0
    %927 = vmatpush1.bf16.msra.mxu0 0
    %928 = vmatprep.subr.bf16.mxu0 0
    %929 = vmatpush1.bf16.msra.mxu0 0
    %930 = vmatprep.subr.bf16.mxu0 0
    %931 = vmatpush1.bf16.msra.mxu0 0
    %932 = vmatprep.subr.bf16.mxu0 0
    %933 = vmatpush1.bf16.msra.mxu0 0
    %934 = vmatprep.subr.bf16.mxu0 0
    %935 = vmatpush1.bf16.msra.mxu0 0
    %936 = vmatprep.subr.bf16.mxu0 0
    %937 = vmatpush1.bf16.msra.mxu0 0
    %938 = vmatprep.subr.bf16.mxu0 0
    %939 = vmatpush1.bf16.msra.mxu0 %v916
    %940 = vmatprep.subr.bf16.mxu0 0
    %941 = vmatpush1.bf16.msra.mxu0 %v915
    %942 = vmatprep.subr.bf16.mxu0 0
    %943 = vmatpush2.bf16.msra.mxu0 0
    %944 = vmatprep.subr.bf16.mxu0 0
    %945 = vmatpush2.bf16.msra.mxu0 0
    %946 = vmatprep.subr.bf16.mxu0 0
    %947 = vmatpush2.bf16.msra.mxu0 0
    %948 = vmatprep.subr.bf16.mxu0 0
    %949 = vmatpush2.bf16.msra.mxu0 0
    %950 = vmatprep.subr.bf16.mxu0 0
    %951 = vmatpush2.bf16.msra.mxu0 0
    %952 = vmatprep.subr.bf16.mxu0 0
    %953 = vmatpush2.bf16.msra.mxu0 0
    %954 = vmatprep.subr.bf16.mxu0 0
    %955 = vmatpush2.bf16.msra.mxu0 0
    %956 = vmatprep.subr.bf16.mxu0 0
    %957 = vmatpush2.bf16.msra.mxu0 0
    %958 = vmatprep.mubr.bf16.mxu0 0
    %959 = vmatmul.mubr.bf16.gmra.mxu0 %v924
    %v960 = vpop.f32.mrf.mxu0
    %v961 = vadd.f32 0.0, %v960
    %v962 = vpop.f32.mrf.mxu0
    %v963 = vpop.f32.mrf.mxu0
    %v964 = vadd.f32 0.0, %v963
    %v965 = vpop.f32.mrf.mxu0
    %966 = vdwg.mxu0
    %v967 = vpack.c.bf16 %v964, %v961
    %v969 = vlaneseq
    %v970 = vshrl.u32 %v969, 7
    %v971 = vsub.s32 0, %v970
    %v972 = vrot.slane %v914, %v971
    %v1006 = vunpack.c.l.b16 %v882
    %v1007 = vunpack.c.l.b16 %v883
    %v1008 = vunpack.c.l.b16 %v884
    %v1009 = vunpack.c.l.b16 %v885
    %v1010 = vunpack.c.l.b16 %v886
    %v1011 = vunpack.c.l.b16 %v887
    %v1012 = vunpack.c.l.b16 %v888
    %v1013 = vunpack.c.l.b16 %v889
    %v1014 = vunpack.c.l.b16 %v890
    %v1015 = vunpack.c.l.b16 %v891
    %v1016 = vunpack.c.l.b16 %v892
    %v1017 = vunpack.c.l.b16 %v893
    %v1018 = vunpack.c.l.b16 %v894
    %v1019 = vunpack.c.l.b16 %v895
    %v1020 = vunpack.c.l.b16 %v896
    %v1021 = vunpack.c.l.b16 %v897
    %v1022 = vunpack.c.l.b16 %v898
    %v1023 = vunpack.c.l.b16 %v899
    %v1024 = vunpack.c.l.b16 %v900
    %v1025 = vunpack.c.l.b16 %v901
    %v1026 = vunpack.c.l.b16 %v902
    %v1027 = vunpack.c.l.b16 %v903
    %v1028 = vunpack.c.l.b16 %v904
    %v1029 = vunpack.c.l.b16 %v905
    %v1030 = vunpack.c.l.b16 %v906
    %v1031 = vunpack.c.l.b16 %v907
    %v1032 = vunpack.c.l.b16 %v908
    %v1033 = vunpack.c.l.b16 %v909
    %v1034 = vunpack.c.l.b16 %v910
    %v1035 = vunpack.c.l.b16 %v911
    %v1036 = vunpack.c.l.b16 %v912
    %v1037 = vunpack.c.l.b16 %v913
    %v1038 = vpack.c.b16 %v1007, %v1006
    %v1039 = vpack.c.b16 %v1009, %v1008
    %v1040 = vpack.c.b16 %v1011, %v1010
    %v1041 = vpack.c.b16 %v1013, %v1012
    %v1042 = vpack.c.b16 %v1015, %v1014
    %v1043 = vpack.c.b16 %v1017, %v1016
    %v1044 = vpack.c.b16 %v1019, %v1018
    %v1045 = vpack.c.b16 %v1021, %v1020
    %v1046 = vpack.c.b16 %v1023, %v1022
    %v1047 = vpack.c.b16 %v1025, %v1024
    %v1048 = vpack.c.b16 %v1027, %v1026
    %v1049 = vpack.c.b16 %v1029, %v1028
    %v1050 = vpack.c.b16 %v1031, %v1030
    %v1051 = vpack.c.b16 %v1033, %v1032
    %v1052 = vpack.c.b16 %v1035, %v1034
    %v1053 = vpack.c.b16 %v1037, %v1036
    %1070 = vmatprep.subr.bf16.mxu0 0
    %1071 = vmatpush1.bf16.msra.mxu0 %v1045
    %1072 = vmatprep.subr.bf16.mxu0 0
    %1073 = vmatpush1.bf16.msra.mxu0 %v1044
    %1074 = vmatprep.subr.bf16.mxu0 0
    %1075 = vmatpush1.bf16.msra.mxu0 %v1043
    %1076 = vmatprep.subr.bf16.mxu0 0
    %1077 = vmatpush1.bf16.msra.mxu0 %v1042
    %1078 = vmatprep.subr.bf16.mxu0 0
    %1079 = vmatpush1.bf16.msra.mxu0 %v1041
    %1080 = vmatprep.subr.bf16.mxu0 0
    %1081 = vmatpush1.bf16.msra.mxu0 %v1040
    %1082 = vmatprep.subr.bf16.mxu0 0
    %1083 = vmatpush1.bf16.msra.mxu0 %v1039
    %1084 = vmatprep.subr.bf16.mxu0 0
    %1085 = vmatpush1.bf16.msra.mxu0 %v1038
    %1086 = vmatprep.subr.bf16.mxu0 0
    %1087 = vmatpush2.bf16.msra.mxu0 %v1053
    %1088 = vmatprep.subr.bf16.mxu0 0
    %1089 = vmatpush2.bf16.msra.mxu0 %v1052
    %1090 = vmatprep.subr.bf16.mxu0 0
    %1091 = vmatpush2.bf16.msra.mxu0 %v1051
    %1092 = vmatprep.subr.bf16.mxu0 0
    %1093 = vmatpush2.bf16.msra.mxu0 %v1050
    %1094 = vmatprep.subr.bf16.mxu0 0
    %1095 = vmatpush2.bf16.msra.mxu0 %v1049
    %1096 = vmatprep.subr.bf16.mxu0 0
    %1097 = vmatpush2.bf16.msra.mxu0 %v1048
    %1098 = vmatprep.subr.bf16.mxu0 0
    %1099 = vmatpush2.bf16.msra.mxu0 %v1047
    %1100 = vmatprep.subr.bf16.mxu0 0
    %1101 = vmatpush2.bf16.msra.mxu0 %v1046
    %1102 = vmatprep.mubr.bf16.mxu0 %v967
    %1103 = vmatmul.mubr.bf16.gmra.mxu0 %v915
    %v1104 = vpop.f32.mrf.mxu0
    %v1105 = vadd.f32 %v972, %v1104
    %v1106 = vpop.f32.mrf.mxu0
    %v1107 = vpop.f32.mrf.mxu0
    %v1108 = vadd.f32 %v972, %v1107
    %v1109 = vpop.f32.mrf.mxu0
    %1110 = vdwg.mxu0
    %1111 = vst [vmem:[#allocation15] sm:$0xff] %v1105
    %1112 = vst [vmem:[#allocation15 + $0x8] sm:$0xff] %v1108
    // Predicated region
    $region74: #{tpu_custom_call.1} parent=1 // pred_check
      _
    $region75: #{tpu_custom_call.1} parent=1 // pred_check_branch
      %1114 = sbr.rel (0) target = $region77
    $region76: #{tpu_custom_call.1} parent=1 // pred_region
      %s1116 = ssub.s32 256, 256
      %1117 = vsyncadd [#allocation5], %s1116
      %s1118 = sshll.u32 [#allocation15], 4
      %s1119 = int_to_ptr.vmem [resolvable:$true] %s1118
      %1124 = dma.vmem_to_hbm [thread:$0]  %s1119, 256, %s11, [#allocation5], 128, 128, 8
    $region77: #{tpu_custom_call.1} parent=1 // pred_fallthru
      _
    // Predicated region
    $region78: #{tpu_custom_call.1} parent=1 // pred_check
      _
    $region79: #{tpu_custom_call.1} parent=1 // pred_check_branch
      %1126 = sbr.rel (0) target = $region81
    $region80: #{tpu_custom_call.1} parent=1 // pred_region
      %1127 = dma.done [#allocation5], 256
    $region81: #{tpu_custom_call.1} parent=1 // pred_fallthru
      _
    %1128 = vsyncpa [#allocation4], 1
    %1129 = vsyncpa [#allocation7], 1
    %1130 = vsyncpa [#allocation10], 1
    %1131 = vsyncpa [#allocation13], 1
    %1132 = vsyncpa [#allocation5], 1

</llo_original>
